<compile_context>
chip_gen: v5e
topology: v5e:2x2
jax: 0.10.0
libtpu: 0.0.40
codegen_flags: <defaults>
</compile_context>

<pallas_src>
import functools

import jax
import jax.numpy as jnp
from jax.experimental import pallas as pl
from jax.experimental.pallas import tpu as pltpu

EPS = 1e-5  # nn.InstanceNorm2d default eps


def _instance_norm(y):
    # y: (CP, HW). One-pass biased stats per row (torch InstanceNorm2d, affine=False).
    inv_hw = 1.0 / y.shape[-1]
    mean = jnp.sum(y, axis=-1, keepdims=True) * inv_hw
    meansq = jnp.sum(y * y, axis=-1, keepdims=True) * inv_hw
    var = jnp.maximum(meansq - mean * mean, 0.0)
    return (y - mean) * jax.lax.rsqrt(var + EPS)


def _resblock_kernel(x_ref, w1_ref, w2_ref, mask_ref, out_ref, *, shifts):
    # x_ref   : (1, CP, HW)   zero-padded input image (identity for residual)
    # w1_ref  : (CP, 9*CP)    conv1 weights, taps folded into K (zero-padded)
    # w2_ref  : (CP, 9*CP)    conv2 weights, same layout
    # mask_ref: (9, HW)       0/1 validity mask per tap (image borders / row wrap)
    # out_ref : (1, CP, HW)
    HW = x_ref.shape[-1]
    x = x_ref[0]                                             # (CP, HW)

    # Hoist the nine mask rows (used by both convs).
    mask_rows = [mask_ref[t:t + 1, :] for t in range(9)]     # each (1, HW)

    def conv3x3(inp, wmat):
        # Build the (9*CP, HW) tap slab fully in-register: roll along lanes
        # (XLU) + mask multiply (VPU), then one K = 9*CP MXU matmul.
        taps = []
        for t, s in enumerate(shifts):
            if s == 0:
                taps.append(inp)                             # center tap, mask == 1
            else:
                rolled = pltpu.roll(inp, shift=(-s) % HW, axis=1)
                taps.append(rolled * mask_rows[t])
        slab = jnp.concatenate(taps, axis=0)                 # (9*CP, HW), tile-aligned
        return jnp.dot(wmat, slab, preferred_element_type=jnp.float32)

    y = conv3x3(x, w1_ref[...])                              # conv1
    y = jnp.maximum(_instance_norm(y), 0.0)                  # IN + ReLU
    z = _instance_norm(conv3x3(y, w2_ref[...]))              # conv2 + IN

    out_ref[0] = (z + x).astype(out_ref.dtype)               # residual add


def _fold_weights(w_oihw, C, CP):
    # (C, C, 3, 3) OIHW -> (CP, 9*CP) with K index = (dy*3 + dx)*CP + ci.
    w = jnp.transpose(w_oihw.astype(jnp.float32), (0, 2, 3, 1))      # (C, 3, 3, C)
    w = jnp.pad(w, ((0, CP - C), (0, 0), (0, 0), (0, CP - C)))       # (CP, 3, 3, CP)
    return w.reshape(CP, 9 * CP)


def residual_block(x_nchw, w1_oihw, w2_oihw):
    """x_nchw: (N, C, H, W) float32. Weights in PyTorch OIHW layout (C, C, 3, 3)."""
    N, C, H, W = x_nchw.shape
    HW = H * W
    CP = ((C + 7) // 8) * 8                                   # sublane-fill padding

    x = x_nchw.astype(jnp.float32).reshape(N, C, HW)
    x_p = jnp.pad(x, ((0, 0), (0, CP - C), (0, 0)))           # (N, CP, HW)

    w1mat = _fold_weights(w1_oihw, C, CP)                     # (CP, 9*CP)
    w2mat = _fold_weights(w2_oihw, C, CP)

    # 0/1 validity masks and flat lane shifts for the nine 3x3 taps
    # (implicit zero padding + the row-wrap of the flattened spatial axis).
    hh = jnp.arange(H).reshape(H, 1)
    ww = jnp.arange(W).reshape(1, W)
    shifts, rows = [], []
    for dy in range(3):
        for dx in range(3):
            oy, ox = dy - 1, dx - 1
            shifts.append(oy * W + ox)
            valid = ((hh + oy >= 0) & (hh + oy < H) &
                     (ww + ox >= 0) & (ww + ox < W))
            rows.append(valid.reshape(HW))
    tap_mask = jnp.stack(rows, axis=0).astype(jnp.float32)    # (9, HW)

    kernel = functools.partial(_resblock_kernel, shifts=tuple(shifts))

    out_p = pl.pallas_call(
        kernel,
        out_shape=jax.ShapeDtypeStruct((N, CP, HW), jnp.float32),
        grid_spec=pltpu.PrefetchScalarGridSpec(
            num_scalar_prefetch=0,
            grid=(N,),
            in_specs=[
                pl.BlockSpec((1, CP, HW), lambda n: (n, 0, 0)),
                pl.BlockSpec((CP, 9 * CP), lambda n: (0, 0)),
                pl.BlockSpec((CP, 9 * CP), lambda n: (0, 0)),
                pl.BlockSpec((9, HW), lambda n: (0, 0)),
            ],
            out_specs=pl.BlockSpec((1, CP, HW), lambda n: (n, 0, 0)),
        ),
        compiler_params=pltpu.CompilerParams(
            dimension_semantics=("parallel",)),
    )(x_p, w1mat, w2mat, tap_mask)

    return out_p[:, :C, :].reshape(N, C, H, W)


def _reference(x_nchw, w1_oihw, w2_oihw):
    # Pure-JAX reference mirroring the PyTorch module (validation only).
    def conv(x, w):
        return jax.lax.conv_general_dilated(
            x, w, window_strides=(1, 1), padding=((1, 1), (1, 1)),
            dimension_numbers=("NCHW", "OIHW", "NCHW"))

    def inorm(x):
        m = jnp.mean(x, axis=(2, 3), keepdims=True)
        v = jnp.mean((x - m) ** 2, axis=(2, 3), keepdims=True)
        return (x - m) / jnp.sqrt(v + EPS)

    out = jnp.maximum(inorm(conv(x_nchw, w1_oihw)), 0.0)
    out = inorm(conv(out, w2_oihw))
    return out + x_nchw


if __name__ == "__main__":
    key = jax.random.PRNGKey(0)
    k_x, k_w1, k_w2 = jax.random.split(key, 3)

    N, C, H, W = 2, 4, 16, 16
    x = jax.random.normal(k_x, (N, C, H, W), dtype=jnp.float32)
    # Deterministic synthetic conv weights (shape = nn.Conv2d(C, C, 3) weight).
    fan_in = C * 3 * 3
    w1 = jax.random.normal(k_w1, (C, C, 3, 3), dtype=jnp.float32) / jnp.sqrt(fan_in)
    w2 = jax.random.normal(k_w2, (C, C, 3, 3), dtype=jnp.float32) / jnp.sqrt(fan_in)

    out = jax.block_until_ready(residual_block(x, w1, w2))

    ref = _reference(x, w1, w2)
    assert out.shape == (N, C, H, W)
    assert jnp.allclose(out, ref, atol=1e-3, rtol=1e-3), "mismatch vs reference"

    print("KERNEL_OK")
</pallas_src>

<mosaic_0001>
module attributes {stable_mosaic.version = 11 : i64} {
  func.func @_resblock_kernel(%arg0: i32, %arg1: memref<1x8x256xf32, #tpu.memory_space<vmem>>, %arg2: memref<8x72xf32, #tpu.memory_space<vmem>>, %arg3: memref<8x72xf32, #tpu.memory_space<vmem>>, %arg4: memref<9x256xf32, #tpu.memory_space<vmem>>, %arg5: memref<1x8x256xf32, #tpu.memory_space<vmem>>) attributes {dimension_semantics = [#tpu.dimension_semantics<parallel>], iteration_bounds = array<i64: 2>, scalar_prefetch = 0 : i64, scratch_operands = 0 : i64, tpu.core_type = #tpu.core_type<tc>, window_params = [{transform_indices = @transform_0, window_bounds = array<i64: 1, 8, 256>}, {pipeline_mode = #tpu.pipeline_mode<synchronous>, transform_indices = @transform_1, window_bounds = array<i64: 8, 72>}, {pipeline_mode = #tpu.pipeline_mode<synchronous>, transform_indices = @transform_2, window_bounds = array<i64: 8, 72>}, {pipeline_mode = #tpu.pipeline_mode<synchronous>, transform_indices = @transform_3, window_bounds = array<i64: 9, 256>}, {transform_indices = @transform_4, window_bounds = array<i64: 1, 8, 256>}]} {
    %c0 = arith.constant 0 : index
    %c0_0 = arith.constant 0 : index
    %c0_1 = arith.constant 0 : index
    %0 = vector.load %arg1[%c0, %c0_0, %c0_1] : memref<1x8x256xf32, #tpu.memory_space<vmem>>, vector<1x8x256xf32>
    %1 = vector.shape_cast %0 : vector<1x8x256xf32> to vector<8x256xf32>
    %c0_2 = arith.constant 0 : index
    %c0_3 = arith.constant 0 : index
    %2 = vector.load %arg4[%c0_2, %c0_3] : memref<9x256xf32, #tpu.memory_space<vmem>>, vector<1x256xf32>
    %c1 = arith.constant 1 : index
    %c0_4 = arith.constant 0 : index
    %3 = vector.load %arg4[%c1, %c0_4] : memref<9x256xf32, #tpu.memory_space<vmem>>, vector<1x256xf32>
    %c2 = arith.constant 2 : index
    %c0_5 = arith.constant 0 : index
    %4 = vector.load %arg4[%c2, %c0_5] : memref<9x256xf32, #tpu.memory_space<vmem>>, vector<1x256xf32>
    %c3 = arith.constant 3 : index
    %c0_6 = arith.constant 0 : index
    %5 = vector.load %arg4[%c3, %c0_6] : memref<9x256xf32, #tpu.memory_space<vmem>>, vector<1x256xf32>
    %c5 = arith.constant 5 : index
    %c0_7 = arith.constant 0 : index
    %6 = vector.load %arg4[%c5, %c0_7] : memref<9x256xf32, #tpu.memory_space<vmem>>, vector<1x256xf32>
    %c6 = arith.constant 6 : index
    %c0_8 = arith.constant 0 : index
    %7 = vector.load %arg4[%c6, %c0_8] : memref<9x256xf32, #tpu.memory_space<vmem>>, vector<1x256xf32>
    %c7 = arith.constant 7 : index
    %c0_9 = arith.constant 0 : index
    %8 = vector.load %arg4[%c7, %c0_9] : memref<9x256xf32, #tpu.memory_space<vmem>>, vector<1x256xf32>
    %c8 = arith.constant 8 : index
    %c0_10 = arith.constant 0 : index
    %9 = vector.load %arg4[%c8, %c0_10] : memref<9x256xf32, #tpu.memory_space<vmem>>, vector<1x256xf32>
    %c0_11 = arith.constant 0 : index
    %c0_12 = arith.constant 0 : index
    %10 = vector.load %arg2[%c0_11, %c0_12] : memref<8x72xf32, #tpu.memory_space<vmem>>, vector<8x72xf32>
    %c17_i32 = arith.constant 17 : i32
    %11 = tpu.dynamic_rotate %1 by %c17_i32 dim 1 : vector<8x256xf32>, i32 -> vector<8x256xf32>
    %12 = vector.broadcast %2 : vector<1x256xf32> to vector<8x256xf32>
    %13 = arith.mulf %11, %12 : vector<8x256xf32>
    %c16_i32 = arith.constant 16 : i32
    %14 = tpu.dynamic_rotate %1 by %c16_i32 dim 1 : vector<8x256xf32>, i32 -> vector<8x256xf32>
    %15 = vector.broadcast %3 : vector<1x256xf32> to vector<8x256xf32>
    %16 = arith.mulf %14, %15 : vector<8x256xf32>
    %c15_i32 = arith.constant 15 : i32
    %17 = tpu.dynamic_rotate %1 by %c15_i32 dim 1 : vector<8x256xf32>, i32 -> vector<8x256xf32>
    %18 = vector.broadcast %4 : vector<1x256xf32> to vector<8x256xf32>
    %19 = arith.mulf %17, %18 : vector<8x256xf32>
    %c1_i32 = arith.constant 1 : i32
    %20 = tpu.dynamic_rotate %1 by %c1_i32 dim 1 : vector<8x256xf32>, i32 -> vector<8x256xf32>
    %21 = vector.broadcast %5 : vector<1x256xf32> to vector<8x256xf32>
    %22 = arith.mulf %20, %21 : vector<8x256xf32>
    %c255_i32 = arith.constant 255 : i32
    %23 = tpu.dynamic_rotate %1 by %c255_i32 dim 1 : vector<8x256xf32>, i32 -> vector<8x256xf32>
    %24 = vector.broadcast %6 : vector<1x256xf32> to vector<8x256xf32>
    %25 = arith.mulf %23, %24 : vector<8x256xf32>
    %c241_i32 = arith.constant 241 : i32
    %26 = tpu.dynamic_rotate %1 by %c241_i32 dim 1 : vector<8x256xf32>, i32 -> vector<8x256xf32>
    %27 = vector.broadcast %7 : vector<1x256xf32> to vector<8x256xf32>
    %28 = arith.mulf %26, %27 : vector<8x256xf32>
    %c240_i32 = arith.constant 240 : i32
    %29 = tpu.dynamic_rotate %1 by %c240_i32 dim 1 : vector<8x256xf32>, i32 -> vector<8x256xf32>
    %30 = vector.broadcast %8 : vector<1x256xf32> to vector<8x256xf32>
    %31 = arith.mulf %29, %30 : vector<8x256xf32>
    %c239_i32 = arith.constant 239 : i32
    %32 = tpu.dynamic_rotate %1 by %c239_i32 dim 1 : vector<8x256xf32>, i32 -> vector<8x256xf32>
    %33 = vector.broadcast %9 : vector<1x256xf32> to vector<8x256xf32>
    %34 = arith.mulf %32, %33 : vector<8x256xf32>
    %35 = tpu.concatenate %13, %16, %19, %22, %1, %25, %28, %31, %34 in 0 : vector<8x256xf32>, vector<8x256xf32>, vector<8x256xf32>, vector<8x256xf32>, vector<8x256xf32>, vector<8x256xf32>, vector<8x256xf32>, vector<8x256xf32>, vector<8x256xf32> -> vector<72x256xf32>
    %cst = arith.constant dense<0.000000e+00> : vector<8x256xf32>
    %36 = tpu.matmul %10, %35, %cst {dimension_numbers = #tpu.dot_dimension_numbers<[1], [0], [0], [1], [0, 0, 1, 1], [], []>} : vector<8x72xf32>, vector<72x256xf32>, vector<8x256xf32> -> vector<8x256xf32>
    %cst_13 = arith.constant dense<0.000000e+00> : vector<8xf32>
    %37 = vector.multi_reduction <add>, %36, %cst_13 [1] : vector<8x256xf32> to vector<8xf32>
    %38 = vector.shape_cast %37 : vector<8xf32> to vector<8x1xf32>
    %cst_14 = arith.constant 3.906250e-03 : f32
    %39 = vector.broadcast %cst_14 : f32 to vector<8x1xf32>
    %40 = arith.mulf %38, %39 : vector<8x1xf32>
    %41 = arith.mulf %36, %36 : vector<8x256xf32>
    %cst_15 = arith.constant dense<0.000000e+00> : vector<8xf32>
    %42 = vector.multi_reduction <add>, %41, %cst_15 [1] : vector<8x256xf32> to vector<8xf32>
    %43 = vector.shape_cast %42 : vector<8xf32> to vector<8x1xf32>
    %cst_16 = arith.constant 3.906250e-03 : f32
    %44 = vector.broadcast %cst_16 : f32 to vector<8x1xf32>
    %45 = arith.mulf %43, %44 : vector<8x1xf32>
    %46 = arith.mulf %40, %40 : vector<8x1xf32>
    %47 = arith.subf %45, %46 : vector<8x1xf32>
    %cst_17 = arith.constant 0.000000e+00 : f32
    %48 = vector.broadcast %cst_17 : f32 to vector<8x1xf32>
    %49 = arith.maximumf %47, %48 : vector<8x1xf32>
    %50 = vector.broadcast %40 : vector<8x1xf32> to vector<8x256xf32>
    %51 = arith.subf %36, %50 : vector<8x256xf32>
    %cst_18 = arith.constant 9.99999974E-6 : f32
    %52 = vector.broadcast %cst_18 : f32 to vector<8x1xf32>
    %53 = arith.addf %49, %52 : vector<8x1xf32>
    %54 = math.rsqrt %53 : vector<8x1xf32>
    %55 = vector.broadcast %54 : vector<8x1xf32> to vector<8x256xf32>
    %56 = arith.mulf %51, %55 : vector<8x256xf32>
    %cst_19 = arith.constant 0.000000e+00 : f32
    %57 = vector.broadcast %cst_19 : f32 to vector<8x256xf32>
    %58 = arith.maximumf %56, %57 : vector<8x256xf32>
    %c0_20 = arith.constant 0 : index
    %c0_21 = arith.constant 0 : index
    %59 = vector.load %arg3[%c0_20, %c0_21] : memref<8x72xf32, #tpu.memory_space<vmem>>, vector<8x72xf32>
    %c17_i32_22 = arith.constant 17 : i32
    %60 = tpu.dynamic_rotate %58 by %c17_i32_22 dim 1 : vector<8x256xf32>, i32 -> vector<8x256xf32>
    %61 = vector.broadcast %2 : vector<1x256xf32> to vector<8x256xf32>
    %62 = arith.mulf %60, %61 : vector<8x256xf32>
    %c16_i32_23 = arith.constant 16 : i32
    %63 = tpu.dynamic_rotate %58 by %c16_i32_23 dim 1 : vector<8x256xf32>, i32 -> vector<8x256xf32>
    %64 = vector.broadcast %3 : vector<1x256xf32> to vector<8x256xf32>
    %65 = arith.mulf %63, %64 : vector<8x256xf32>
    %c15_i32_24 = arith.constant 15 : i32
    %66 = tpu.dynamic_rotate %58 by %c15_i32_24 dim 1 : vector<8x256xf32>, i32 -> vector<8x256xf32>
    %67 = vector.broadcast %4 : vector<1x256xf32> to vector<8x256xf32>
    %68 = arith.mulf %66, %67 : vector<8x256xf32>
    %c1_i32_25 = arith.constant 1 : i32
    %69 = tpu.dynamic_rotate %58 by %c1_i32_25 dim 1 : vector<8x256xf32>, i32 -> vector<8x256xf32>
    %70 = vector.broadcast %5 : vector<1x256xf32> to vector<8x256xf32>
    %71 = arith.mulf %69, %70 : vector<8x256xf32>
    %c255_i32_26 = arith.constant 255 : i32
    %72 = tpu.dynamic_rotate %58 by %c255_i32_26 dim 1 : vector<8x256xf32>, i32 -> vector<8x256xf32>
    %73 = vector.broadcast %6 : vector<1x256xf32> to vector<8x256xf32>
    %74 = arith.mulf %72, %73 : vector<8x256xf32>
    %c241_i32_27 = arith.constant 241 : i32
    %75 = tpu.dynamic_rotate %58 by %c241_i32_27 dim 1 : vector<8x256xf32>, i32 -> vector<8x256xf32>
    %76 = vector.broadcast %7 : vector<1x256xf32> to vector<8x256xf32>
    %77 = arith.mulf %75, %76 : vector<8x256xf32>
    %c240_i32_28 = arith.constant 240 : i32
    %78 = tpu.dynamic_rotate %58 by %c240_i32_28 dim 1 : vector<8x256xf32>, i32 -> vector<8x256xf32>
    %79 = vector.broadcast %8 : vector<1x256xf32> to vector<8x256xf32>
    %80 = arith.mulf %78, %79 : vector<8x256xf32>
    %c239_i32_29 = arith.constant 239 : i32
    %81 = tpu.dynamic_rotate %58 by %c239_i32_29 dim 1 : vector<8x256xf32>, i32 -> vector<8x256xf32>
    %82 = vector.broadcast %9 : vector<1x256xf32> to vector<8x256xf32>
    %83 = arith.mulf %81, %82 : vector<8x256xf32>
    %84 = tpu.concatenate %62, %65, %68, %71, %58, %74, %77, %80, %83 in 0 : vector<8x256xf32>, vector<8x256xf32>, vector<8x256xf32>, vector<8x256xf32>, vector<8x256xf32>, vector<8x256xf32>, vector<8x256xf32>, vector<8x256xf32>, vector<8x256xf32> -> vector<72x256xf32>
    %cst_30 = arith.constant dense<0.000000e+00> : vector<8x256xf32>
    %85 = tpu.matmul %59, %84, %cst_30 {dimension_numbers = #tpu.dot_dimension_numbers<[1], [0], [0], [1], [0, 0, 1, 1], [], []>} : vector<8x72xf32>, vector<72x256xf32>, vector<8x256xf32> -> vector<8x256xf32>
    %cst_31 = arith.constant dense<0.000000e+00> : vector<8xf32>
    %86 = vector.multi_reduction <add>, %85, %cst_31 [1] : vector<8x256xf32> to vector<8xf32>
    %87 = vector.shape_cast %86 : vector<8xf32> to vector<8x1xf32>
    %cst_32 = arith.constant 3.906250e-03 : f32
    %88 = vector.broadcast %cst_32 : f32 to vector<8x1xf32>
    %89 = arith.mulf %87, %88 : vector<8x1xf32>
    %90 = arith.mulf %85, %85 : vector<8x256xf32>
    %cst_33 = arith.constant dense<0.000000e+00> : vector<8xf32>
    %91 = vector.multi_reduction <add>, %90, %cst_33 [1] : vector<8x256xf32> to vector<8xf32>
    %92 = vector.shape_cast %91 : vector<8xf32> to vector<8x1xf32>
    %cst_34 = arith.constant 3.906250e-03 : f32
    %93 = vector.broadcast %cst_34 : f32 to vector<8x1xf32>
    %94 = arith.mulf %92, %93 : vector<8x1xf32>
    %95 = arith.mulf %89, %89 : vector<8x1xf32>
    %96 = arith.subf %94, %95 : vector<8x1xf32>
    %cst_35 = arith.constant 0.000000e+00 : f32
    %97 = vector.broadcast %cst_35 : f32 to vector<8x1xf32>
    %98 = arith.maximumf %96, %97 : vector<8x1xf32>
    %99 = vector.broadcast %89 : vector<8x1xf32> to vector<8x256xf32>
    %100 = arith.subf %85, %99 : vector<8x256xf32>
    %cst_36 = arith.constant 9.99999974E-6 : f32
    %101 = vector.broadcast %cst_36 : f32 to vector<8x1xf32>
    %102 = arith.addf %98, %101 : vector<8x1xf32>
    %103 = math.rsqrt %102 : vector<8x1xf32>
    %104 = vector.broadcast %103 : vector<8x1xf32> to vector<8x256xf32>
    %105 = arith.mulf %100, %104 : vector<8x256xf32>
    %106 = arith.addf %105, %1 : vector<8x256xf32>
    %c0_37 = arith.constant 0 : index
    %c0_38 = arith.constant 0 : index
    %c0_39 = arith.constant 0 : index
    %107 = vector.load %arg5[%c0_37, %c0_38, %c0_39] : memref<1x8x256xf32, #tpu.memory_space<vmem>>, vector<1x8x256xf32>
    %108 = vector.shape_cast %107 : vector<1x8x256xf32> to vector<8x256xf32>
    %109 = vector.shape_cast %106 : vector<8x256xf32> to vector<1x8x256xf32>
    tpu.vector_store %arg5[%c0_37, %c0_38, %c0_39], %109 {strides = array<i32>} : memref<1x8x256xf32, #tpu.memory_space<vmem>>, vector<1x8x256xf32>,
    return
  }
  func.func @transform_0(%arg0: i32) -> (i32, i32, i32) {
    %c0_i32 = arith.constant 0 : i32
    %c0_i32_0 = arith.constant 0 : i32
    %c0_i32_1 = arith.constant 0 : i32
    return %arg0, %c0_i32, %c0_i32_0 : i32, i32, i32
  }
  func.func @transform_1(%arg0: i32) -> (i32, i32) {
    %c0_i32 = arith.constant 0 : i32
    %c0_i32_0 = arith.constant 0 : i32
    %c0_i32_1 = arith.constant 0 : i32
    return %c0_i32, %c0_i32_0 : i32, i32
  }
  func.func @transform_2(%arg0: i32) -> (i32, i32) {
    %c0_i32 = arith.constant 0 : i32
    %c0_i32_0 = arith.constant 0 : i32
    %c0_i32_1 = arith.constant 0 : i32
    return %c0_i32, %c0_i32_0 : i32, i32
  }
  func.func @transform_3(%arg0: i32) -> (i32, i32) {
    %c0_i32 = arith.constant 0 : i32
    %c0_i32_0 = arith.constant 0 : i32
    %c0_i32_1 = arith.constant 0 : i32
    return %c0_i32, %c0_i32_0 : i32, i32
  }
  func.func @transform_4(%arg0: i32) -> (i32, i32, i32) {
    %c0_i32 = arith.constant 0 : i32
    %c0_i32_0 = arith.constant 0 : i32
    %c0_i32_1 = arith.constant 0 : i32
    return %arg0, %c0_i32, %c0_i32_0 : i32, i32, i32
  }
}

</mosaic_0001>

<llo_original>
// kernel: tpu_custom_call.1
$region0: #{tpu_custom_call.1}
  #allocation0 [shape = 'u32[]', space=smem, size = 0x4, offset = 0x4, fixed_abs, tag = 'smem constant byte address 0x4 - core index']
  #allocation1 [shape = 'u32[72,128]{1,0:T(1,128)}', space=vmem, size = 0x9000, scoped, tag = 'internal scratch']
  %s0 = inlined_call_operand.hbm [shape: f32[2,8,256], index: 0, kind: input, shape index: {}]
  %s1 = inlined_call_operand.hbm [shape: f32[8,72], index: 1, kind: input, shape index: {}]
  %s2 = inlined_call_operand.hbm [shape: f32[8,72], index: 2, kind: input, shape index: {}]
  %s3 = inlined_call_operand.hbm [shape: f32[9,256], index: 3, kind: input, shape index: {}]
  %s4 = inlined_call_operand.hbm [shape: f32[2,8,256], index: 4, kind: output, shape index: {}]
  %s5 = sld [smem:[#allocation0]]
  $region65: #{tpu_custom_call.1} parent=0
    _
  %s7 = ssub.s32 1, %s5
  %s8 = scalar_select 0, %s7, %s5
  $region1: #{tpu_custom_call.1} parent=0
    #allocation2 [shape = 'u8[16384]{0}', space=vmem, size = 0x4000, scoped, tag = 'input window, operand 0']
    #allocation3 [shape = 's32[2]{0}', space=sflag, size = 0x8, scoped, tag = 'scoped memory for tpu_custom_call.1']
    #allocation4 [shape = 's32[2]{0}', space=sflag, size = 0x8, scoped, tag = 'scoped memory for tpu_custom_call.1']
    #allocation5 [shape = 'u8[4096]{0}', space=vmem, size = 0x1000, scoped, tag = 'input window, operand 1, single buffered']
    #allocation6 [shape = 's32[1]{0}', space=sflag, size = 0x4, scoped, tag = 'scoped memory for tpu_custom_call.1']
    #allocation7 [shape = 'u8[4096]{0}', space=vmem, size = 0x1000, scoped, tag = 'input window, operand 2, single buffered']
    #allocation8 [shape = 'u8[16384]{0}', space=vmem, size = 0x4000, scoped, tag = 'input window, operand 3, single buffered']
    #allocation9 [shape = 's32[1]{0}', space=sflag, size = 0x4, scoped, tag = 'scoped memory for tpu_custom_call.1']
    #allocation10 [shape = 'u8[16384]{0}', space=vmem, size = 0x4000, scoped, tag = 'output window, operand 0']
    %9 = vsyncpa [#allocation3], 0
    %s10 = scalar_lea.sflag [#allocation3], 1
    %11 = vsyncpa %s10, 0
    %12 = vsyncpa [#allocation6], 0
    %13 = vsyncpa [#allocation9], 0
    %14 = vsyncpa [#allocation4], 0
    %s15 = scalar_lea.sflag [#allocation4], 1
    %16 = vsyncpa %s15, 0
    loop: start=0, step=1, limit=4
    $region2: #{tpu_custom_call.1} parent=1 // loop_pre_header
      _
    $region3: #{tpu_custom_call.1} parent=1 // loop_header
      %s18 = sphi 0, %s22
      %p19 = scmp.ge.s32.totalorder %s18, 4
      %s28 = sphi 0, %s30
      %s31 = sphi 0, %s28
      %s32 = sphi 0, %s31
      %s48 = sphi 0, %s32
      %s52 = sphi 0, %s52
      %s54 = sphi 0, %s52
      %s55 = sphi 0, %s54
      %s69 = sphi 0, %s55
      %s73 = sphi 0, %s73
      %s75 = sphi 0, %s73
      %s76 = sphi 0, %s75
      %s90 = sphi 0, %s76
      %s94 = sphi 0, %s94
      %s96 = sphi 0, %s94
      %s97 = sphi 0, %s96
      %s111 = sphi 0, %s97
      %s117 = sphi 0, %s119
      %s120 = sphi 0, %s117
      %s121 = sphi 0, %s120
      %s137 = sphi 0, %s121
    $region4: #{tpu_custom_call.1} parent=1 // loop_header_branch
      %21 = sbr.rel (%p19) target = $region8
    $region5: #{tpu_custom_call.1} parent=1 // loop_body
      %s23 = ssub.s32 %s18, 1
      %s24 = ssub.s32 %s18, 2
      %s25 = sadd.s32 %s18, 1
      %s26 = ssub.s32 %s18, %s25
      %p27 = scmp.eq.s32.totalorder %s26, 0
      %s29 = sadd.s32 %s28, 1
      %s30 = scalar_select %p27, %s28, %s29
      %p33 = pneg %p27
      %p34 = scmp.eq.s32.totalorder %s18, 1
      %p35 = por %p33, %p34
      %p36 = scmp.ne.s32.totalorder %s28, %s31
      %p37 = scmp.eq.s32.totalorder %s18, 0
      %p38 = por %p36, %p37
      %p39 = scmp.ne.s32.totalorder %s28, %s31
      %p40 = scmp.eq.s32.totalorder %s23, 1
      %p41 = por %p39, %p40
      %p42 = scmp.ne.s32.totalorder %s31, %s32
      %p43 = scmp.eq.s32.totalorder %s23, 0
      %p44 = por %p42, %p43
      %p45 = scmp.ne.s32.totalorder %s31, %s32
      %p46 = scmp.eq.s32.totalorder %s24, 1
      %p47 = por %p45, %p46
      %p49 = scmp.ne.s32.totalorder %s32, %s48
      %p50 = scmp.eq.s32.totalorder %s24, 0
      %p51 = por %p49, %p50
      %s53 = sadd.s32 %s52, 1
      %p56 = scmp.eq.s32.totalorder %s18, 1
      %p57 = scmp.ne.s32.totalorder %s52, %s54
      %p58 = scmp.eq.s32.totalorder %s18, 0
      %p59 = por %p57, %p58
      %p60 = scmp.ne.s32.totalorder %s52, %s54
      %p61 = scmp.eq.s32.totalorder %s23, 1
      %p62 = por %p60, %p61
      %p63 = scmp.ne.s32.totalorder %s54, %s55
      %p64 = scmp.eq.s32.totalorder %s23, 0
      %p65 = por %p63, %p64
      %p66 = scmp.ne.s32.totalorder %s54, %s55
      %p67 = scmp.eq.s32.totalorder %s24, 1
      %p68 = por %p66, %p67
      %p70 = scmp.ne.s32.totalorder %s55, %s69
      %p71 = scmp.eq.s32.totalorder %s24, 0
      %p72 = por %p70, %p71
      %s74 = sadd.s32 %s73, 1
      %p77 = scmp.eq.s32.totalorder %s18, 1
      %p78 = scmp.ne.s32.totalorder %s73, %s75
      %p79 = scmp.eq.s32.totalorder %s18, 0
      %p80 = por %p78, %p79
      %p81 = scmp.ne.s32.totalorder %s73, %s75
      %p82 = scmp.eq.s32.totalorder %s23, 1
      %p83 = por %p81, %p82
      %p84 = scmp.ne.s32.totalorder %s75, %s76
      %p85 = scmp.eq.s32.totalorder %s23, 0
      %p86 = por %p84, %p85
      %p87 = scmp.ne.s32.totalorder %s75, %s76
      %p88 = scmp.eq.s32.totalorder %s24, 1
      %p89 = por %p87, %p88
      %p91 = scmp.ne.s32.totalorder %s76, %s90
      %p92 = scmp.eq.s32.totalorder %s24, 0
      %p93 = por %p91, %p92
      %s95 = sadd.s32 %s94, 1
      %p98 = scmp.eq.s32.totalorder %s18, 1
      %p99 = scmp.ne.s32.totalorder %s94, %s96
      %p100 = scmp.eq.s32.totalorder %s18, 0
      %p101 = por %p99, %p100
      %p102 = scmp.ne.s32.totalorder %s94, %s96
      %p103 = scmp.eq.s32.totalorder %s23, 1
      %p104 = por %p102, %p103
      %p105 = scmp.ne.s32.totalorder %s96, %s97
      %p106 = scmp.eq.s32.totalorder %s23, 0
      %p107 = por %p105, %p106
      %p108 = scmp.ne.s32.totalorder %s96, %s97
      %p109 = scmp.eq.s32.totalorder %s24, 1
      %p110 = por %p108, %p109
      %p112 = scmp.ne.s32.totalorder %s97, %s111
      %p113 = scmp.eq.s32.totalorder %s24, 0
      %p114 = por %p112, %p113
      %s115 = ssub.s32 %s18, %s25
      %p116 = scmp.eq.s32.totalorder %s115, 0
      %s118 = sadd.s32 %s117, 1
      %s119 = scalar_select %p116, %s117, %s118
      %p122 = pneg %p116
      %p123 = scmp.eq.s32.totalorder %s18, 1
      %p124 = por %p122, %p123
      %p125 = scmp.ne.s32.totalorder %s117, %s120
      %p126 = scmp.eq.s32.totalorder %s18, 0
      %p127 = por %p125, %p126
      %p128 = scmp.ne.s32.totalorder %s117, %s120
      %p129 = scmp.eq.s32.totalorder %s23, 1
      %p130 = por %p128, %p129
      %p131 = scmp.ne.s32.totalorder %s120, %s121
      %p132 = scmp.eq.s32.totalorder %s23, 0
      %p133 = por %p131, %p132
      %p134 = scmp.ne.s32.totalorder %s120, %s121
      %p135 = scmp.eq.s32.totalorder %s24, 1
      %p136 = por %p134, %p135
      %p138 = scmp.ne.s32.totalorder %s121, %s137
      %p139 = scmp.eq.s32.totalorder %s24, 0
      %p140 = por %p138, %p139
      %p141 = scmp.le.s32.totalorder 1, %s18
      %p142 = scmp.lt.s32.totalorder %s18, 3
      %p143 = pnand %p141, %p142
      %p144 = pneg %p143
      // Predicated region
      $region9: #{tpu_custom_call.1} parent=5 // pred_check
        _
      $region10: #{tpu_custom_call.1} parent=5 // pred_check_branch
        %146 = sbr.rel (%p143) target = $region12
      $region11: #{tpu_custom_call.1} parent=5 // pred_region
        %s147 = ssub.s32 %s18, 1
        // Predicated region
        $region13: #{tpu_custom_call.1} parent=11 // pred_check
          %p148 = pneg %p65
        $region14: #{tpu_custom_call.1} parent=11 // pred_check_branch
          %150 = sbr.rel (%p148) target = $region16
        $region15: #{tpu_custom_call.1} parent=11 // pred_region
          %152 = vsyncadd [#allocation6], 0
          %s154 = sshll.u32 %s1, 4
          %s155 = int_to_ptr.hbm [resolvable:$true] %s154
          %s156 = sshll.u32 [#allocation5], 4
          %s157 = int_to_ptr.vmem [resolvable:$true] %s156
          %159 = dma.hbm_to_vmem [thread:$0]  %s155, 128, %s157, [#allocation6]
        $region16: #{tpu_custom_call.1} parent=11 // pred_fallthru
          _
        // Predicated region
        $region17: #{tpu_custom_call.1} parent=11 // pred_check
          %p160 = pneg %p86
        $region18: #{tpu_custom_call.1} parent=11 // pred_check_branch
          %162 = sbr.rel (%p160) target = $region20
        $region19: #{tpu_custom_call.1} parent=11 // pred_region
          %164 = vsyncadd [#allocation6], 0
          %s166 = sshll.u32 %s2, 4
          %s167 = int_to_ptr.hbm [resolvable:$true] %s166
          %s168 = sshll.u32 [#allocation7], 4
          %s169 = int_to_ptr.vmem [resolvable:$true] %s168
          %171 = dma.hbm_to_vmem [thread:$0]  %s167, 128, %s169, [#allocation6]
        $region20: #{tpu_custom_call.1} parent=11 // pred_fallthru
          _
        // Predicated region
        $region21: #{tpu_custom_call.1} parent=11 // pred_check
          %p172 = pneg %p107
        $region22: #{tpu_custom_call.1} parent=11 // pred_check_branch
          %174 = sbr.rel (%p172) target = $region24
        $region23: #{tpu_custom_call.1} parent=11 // pred_region
          %176 = vsyncadd [#allocation9], 0
          %s177 = sshll.u32 %s3, 4
          %s178 = int_to_ptr.hbm [resolvable:$true] %s177
          %s179 = sshll.u32 [#allocation8], 4
          %s180 = int_to_ptr.vmem [resolvable:$true] %s179
          %185 = dma.hbm_to_vmem [thread:$0]  %s178, 512, %s180, [#allocation9], 256, 256, 16
        $region24: #{tpu_custom_call.1} parent=11 // pred_fallthru
          _
      $region12: #{tpu_custom_call.1} parent=5 // pred_fallthru
        _
      %p186 = scmp.lt.s32.totalorder %s18, 2
      // Predicated region
      $region25: #{tpu_custom_call.1} parent=5 // pred_check
        %p187 = pneg %p186
      $region26: #{tpu_custom_call.1} parent=5 // pred_check_branch
        %189 = sbr.rel (%p187) target = $region28
      $region27: #{tpu_custom_call.1} parent=5 // pred_region
        // Predicated region
        $region29: #{tpu_custom_call.1} parent=27 // pred_check
          %p190 = pneg %p38
        $region30: #{tpu_custom_call.1} parent=27 // pred_check_branch
          %192 = sbr.rel (%p190) target = $region32
        $region31: #{tpu_custom_call.1} parent=27 // pred_region
          %s193 = sand.u32 %s28, 1
          %s194 = scalar_lea.sflag [#allocation3], %s193
          %s195 = sand.u32 %s28, 1
          %s196 = smul.addr %s195, 16
          %s197 = scalar_lea.vmem [#allocation2], %s196
          %199 = vsyncadd %s194, 0
          %s200 = smul.addr %s18, 2
          %s201 = smul.addr %s200, 8
          %s202 = scalar_lea.hbm %s0, %s201
          %s204 = sshll.u32 %s202, 4
          %s205 = int_to_ptr.hbm [resolvable:$true] %s204
          %s206 = sshll.u32 %s197, 4
          %s207 = int_to_ptr.vmem [resolvable:$true] %s206
          %209 = dma.hbm_to_vmem [thread:$0]  %s205, 256, %s207, %s194
        $region32: #{tpu_custom_call.1} parent=27 // pred_fallthru
          _
      $region28: #{tpu_custom_call.1} parent=5 // pred_fallthru
        _
      %p210 = scmp.le.s32.totalorder 1, %s18
      %p211 = scmp.lt.s32.totalorder %s18, 3
      %p212 = pnand %p210, %p211
      %p213 = pneg %p212
      // Predicated region
      $region33: #{tpu_custom_call.1} parent=5 // pred_check
        _
      $region34: #{tpu_custom_call.1} parent=5 // pred_check_branch
        %215 = sbr.rel (%p212) target = $region36
      $region35: #{tpu_custom_call.1} parent=5 // pred_region
        %s216 = ssub.s32 %s18, 1
        %s217 = sand.u32 %s31, 1
        %s218 = scalar_lea.sflag [#allocation3], %s217
        %s219 = sand.u32 %s31, 1
        %s220 = smul.addr %s219, 16
        %s221 = scalar_lea.vmem [#allocation2], %s220
        // Predicated region
        $region37: #{tpu_custom_call.1} parent=35 // pred_check
          %p222 = pneg %p44
        $region38: #{tpu_custom_call.1} parent=35 // pred_check_branch
          %224 = sbr.rel (%p222) target = $region40
        $region39: #{tpu_custom_call.1} parent=35 // pred_region
          %226 = dma.done %s218, 256
        $region40: #{tpu_custom_call.1} parent=35 // pred_fallthru
          _
        // Predicated region
        $region41: #{tpu_custom_call.1} parent=35 // pred_check
          %p227 = pneg %p65
        $region42: #{tpu_custom_call.1} parent=35 // pred_check_branch
          %229 = sbr.rel (%p227) target = $region44
        $region43: #{tpu_custom_call.1} parent=35 // pred_region
          %231 = dma.done [#allocation6], 128
        $region44: #{tpu_custom_call.1} parent=35 // pred_fallthru
          _
        // Predicated region
        $region45: #{tpu_custom_call.1} parent=35 // pred_check
          %p232 = pneg %p86
        $region46: #{tpu_custom_call.1} parent=35 // pred_check_branch
          %234 = sbr.rel (%p232) target = $region48
        $region47: #{tpu_custom_call.1} parent=35 // pred_region
          %236 = dma.done [#allocation6], 128
        $region48: #{tpu_custom_call.1} parent=35 // pred_fallthru
          _
        // Predicated region
        $region49: #{tpu_custom_call.1} parent=35 // pred_check
          %p237 = pneg %p107
        $region50: #{tpu_custom_call.1} parent=35 // pred_check_branch
          %239 = sbr.rel (%p237) target = $region52
        $region51: #{tpu_custom_call.1} parent=35 // pred_region
          %241 = dma.done [#allocation9], 512
        $region52: #{tpu_custom_call.1} parent=35 // pred_fallthru
          _
        %s242 = sand.u32 %s31, 1
        %s243 = scalar_lea.sflag [#allocation3], %s242
        %s244 = sand.u32 %s31, 1
        %s245 = smul.addr %s244, 16
        %s246 = scalar_lea.vmem [#allocation2], %s245
        %p247 = pneg %p44
        %p248 = pneg %p41
        %p249 = pneg %p65
        %p250 = pneg %p62
        %p251 = pneg %p86
        %p252 = pneg %p83
        %p253 = pneg %p107
        %p254 = pneg %p104
        %p255 = pneg %p133
        %p256 = pneg %p130
        %s257 = sand.u32 %s120, 1
        %s258 = scalar_lea.sflag [#allocation4], %s257
        %s259 = sand.u32 %s120, 1
        %s260 = smul.addr %s259, 16
        %s261 = scalar_lea.vmem [#allocation10], %s260
        %v262 = vld [vmem:[%s221] sm:$0xff]
        %v263 = vld [vmem:[%s221 + $0x8] sm:$0xff]
        %v264 = vld [vmem:[#allocation8] ss:$8 sm:$0x3]
        %s265 = scalar_lea.vmem [#allocation8], 1
        %v266 = vld [vmem:[%s265] ss:$8 sm:$0x3]
        %s267 = scalar_lea.vmem [#allocation8], 2
        %v268 = vld [vmem:[%s267] ss:$8 sm:$0x3]
        %s269 = scalar_lea.vmem [#allocation8], 3
        %v270 = vld [vmem:[%s269] ss:$8 sm:$0x3]
        %s271 = scalar_lea.vmem [#allocation8], 5
        %v272 = vld [vmem:[%s271] ss:$8 sm:$0x3]
        %s273 = scalar_lea.vmem [#allocation8], 6
        %v274 = vld [vmem:[%s273] ss:$8 sm:$0x3]
        %s275 = scalar_lea.vmem [#allocation8], 7
        %v276 = vld [vmem:[%s275] ss:$8 sm:$0x3]
        %s277 = scalar_lea.vmem [#allocation8], 16
        %v278 = vld [vmem:[%s277] ss:$8 sm:$0x3]
        %v279 = vld [vmem:[#allocation5] sm:$0xff]
        %280 = vrot.lane.b32.xlu0 %v262, 17
        %v281 = vpop.permute.xlu0 %280
        %282 = vrot.lane.b32.xlu0 %v263, 17
        %v283 = vpop.permute.xlu0 %282
        %v284 = vlaneseq
        %v285 = vand.u32 %v284, 127
        %vm286 = vcmp.lt.s32.totalorder %v285, 17
        %v287 = vsel %vm286, %v281, %v283
        %v288 = vsel %vm286, %v283, %v281
        %v290 = vperm.slane %v264, 0
        %v291 = vperm.slane %v264, 1
        %v294 = vmul.f32 %v288, %v290
        %v295 = vmul.f32 %v287, %v291
        %296 = vrot.lane.b32.xlu0 %v262, 16
        %v297 = vpop.permute.xlu0 %296
        %298 = vrot.lane.b32.xlu0 %v263, 16
        %v299 = vpop.permute.xlu0 %298
        %vm300 = vcmp.lt.s32.totalorder %v285, 16
        %v301 = vsel %vm300, %v297, %v299
        %v302 = vsel %vm300, %v299, %v297
        %v304 = vperm.slane %v266, 0
        %v305 = vperm.slane %v266, 1
        %v308 = vmul.f32 %v302, %v304
        %v309 = vmul.f32 %v301, %v305
        %310 = vrot.lane.b32.xlu0 %v262, 15
        %v311 = vpop.permute.xlu0 %310
        %312 = vrot.lane.b32.xlu0 %v263, 15
        %v313 = vpop.permute.xlu0 %312
        %vm314 = vcmp.lt.s32.totalorder %v285, 15
        %v315 = vsel %vm314, %v311, %v313
        %v316 = vsel %vm314, %v313, %v311
        %v318 = vperm.slane %v268, 0
        %v319 = vperm.slane %v268, 1
        %v322 = vmul.f32 %v316, %v318
        %v323 = vmul.f32 %v315, %v319
        %324 = vrot.lane.b32.xlu0 %v262, 1
        %v325 = vpop.permute.xlu0 %324
        %326 = vrot.lane.b32.xlu0 %v263, 1
        %v327 = vpop.permute.xlu0 %326
        %vm328 = vcmp.lt.s32.totalorder %v285, 1
        %v329 = vsel %vm328, %v325, %v327
        %v330 = vsel %vm328, %v327, %v325
        %v332 = vperm.slane %v270, 0
        %v333 = vperm.slane %v270, 1
        %v336 = vmul.f32 %v330, %v332
        %v337 = vmul.f32 %v329, %v333
        %338 = vrot.lane.b32.xlu0 %v262, 127
        %v339 = vpop.permute.xlu0 %338
        %340 = vrot.lane.b32.xlu0 %v263, 127
        %v341 = vpop.permute.xlu0 %340
        %vm342 = vcmp.lt.s32.totalorder %v285, 127
        %v343 = vsel %vm342, %v339, %v341
        %v344 = vsel %vm342, %v341, %v339
        %v346 = vperm.slane %v272, 0
        %v347 = vperm.slane %v272, 1
        %v350 = vmul.f32 %v343, %v346
        %v351 = vmul.f32 %v344, %v347
        %352 = vrot.lane.b32.xlu0 %v262, 113
        %v353 = vpop.permute.xlu0 %352
        %354 = vrot.lane.b32.xlu0 %v263, 113
        %v355 = vpop.permute.xlu0 %354
        %vm356 = vcmp.lt.s32.totalorder %v285, 113
        %v357 = vsel %vm356, %v353, %v355
        %v358 = vsel %vm356, %v355, %v353
        %v360 = vperm.slane %v274, 0
        %v361 = vperm.slane %v274, 1
        %v364 = vmul.f32 %v357, %v360
        %v365 = vmul.f32 %v358, %v361
        %366 = vrot.lane.b32.xlu0 %v262, 112
        %v367 = vpop.permute.xlu0 %366
        %368 = vrot.lane.b32.xlu0 %v263, 112
        %v369 = vpop.permute.xlu0 %368
        %vm370 = vcmp.lt.s32.totalorder %v285, 112
        %v371 = vsel %vm370, %v367, %v369
        %v372 = vsel %vm370, %v369, %v367
        %v374 = vperm.slane %v276, 0
        %v375 = vperm.slane %v276, 1
        %v378 = vmul.f32 %v371, %v374
        %v379 = vmul.f32 %v372, %v375
        %380 = vrot.lane.b32.xlu0 %v262, 111
        %v381 = vpop.permute.xlu0 %380
        %382 = vrot.lane.b32.xlu0 %v263, 111
        %v383 = vpop.permute.xlu0 %382
        %vm384 = vcmp.lt.s32.totalorder %v285, 111
        %v385 = vsel %vm384, %v381, %v383
        %v386 = vsel %vm384, %v383, %v381
        %v388 = vperm.slane %v278, 0
        %v389 = vperm.slane %v278, 1
        %v392 = vmul.f32 %v385, %v388
        %v393 = vmul.f32 %v386, %v389
        %vm394 = vcmask 588800
        %v396 = vsel %vm394, %v279, 0
        %398 = vmatpush.msra.mxu0 0.0
        %399 = vmatpush.msra.mxu0 0.0
        %400 = vmatpush.msra.mxu0 0.0
        %401 = vmatpush.msra.mxu0 0.0
        %402 = vmatpush.msra.mxu0 0.0
        %403 = vmatpush.msra.mxu0 0.0
        %404 = vmatpush.msra.mxu0 0.0
        %405 = vmatpush.msra.mxu0 %v392
        %406 = vmatpush.msra.mxu0 %v378
        %407 = vmatpush.msra.mxu0 %v364
        %408 = vmatpush.msra.mxu0 %v350
        %409 = vmatpush.msra.mxu0 %v262
        %410 = vmatpush.msra.mxu0 %v336
        %411 = vmatpush.msra.mxu0 %v322
        %412 = vmatpush.msra.mxu0 %v308
        %413 = vmatpush.msra.mxu0 %v294
        %414 = vmatmul.f32.gmra.mxu0 %v396
        %v415 = vpop.f32.mrf.mxu0
        %v416 = vadd.f32 0.0, %v415
        %417 = vdwg.mxu0
        %418 = vmatpush.msra.mxu0 0.0
        %419 = vmatpush.msra.mxu0 0.0
        %420 = vmatpush.msra.mxu0 0.0
        %421 = vmatpush.msra.mxu0 0.0
        %422 = vmatpush.msra.mxu0 0.0
        %423 = vmatpush.msra.mxu0 0.0
        %424 = vmatpush.msra.mxu0 0.0
        %425 = vmatpush.msra.mxu0 %v393
        %426 = vmatpush.msra.mxu0 %v379
        %427 = vmatpush.msra.mxu0 %v365
        %428 = vmatpush.msra.mxu0 %v351
        %429 = vmatpush.msra.mxu0 %v263
        %430 = vmatpush.msra.mxu0 %v337
        %431 = vmatpush.msra.mxu0 %v323
        %432 = vmatpush.msra.mxu0 %v309
        %433 = vmatpush.msra.mxu0 %v295
        %434 = vmatmul.f32.gmra.mxu0 %v396
        %v435 = vpop.f32.mrf.mxu0
        %v436 = vadd.f32 0.0, %v435
        %437 = vdwg.mxu0
        %v438 = vadd.f32 %v416, %v436
        %439 = vadd.xlane.f32.xlu0 %v438
        %v440 = vpop.xlane.xlu0 %439
        %v441 = vmul.f32 %v440, 0.00390625
        %v442 = vmul.f32 %v416, %v416
        %v443 = vmul.f32 %v436, %v436
        %v444 = vadd.f32 %v442, %v443
        %445 = vadd.xlane.f32.xlu0 %v444
        %v446 = vpop.xlane.xlu0 %445
        %v447 = vmul.f32 %v446, 0.00390625
        %v448 = vmul.f32 %v441, %v441
        %v449 = vsub.f32 %v447, %v448
        %v450 = vmax.f32 %v449, 0.0
        %v451 = vsub.f32 %v416, %v441
        %v452 = vsub.f32 %v436, %v441
        %v453 = vadd.f32 %v450, 1e-05
        %v454 = vrsqrt.pop %v453
        %v455 = vmul.f32 %v454, %v453
        %v456 = vmul.f32 %v455, %v454
        %v457 = vmul.f32 0.5, %v456
        %v458 = vsub.f32 1.5, %v457
        %v459 = vmul.f32 %v454, %v458
        %vm460 = vweird.f32 %v453
        %vm461 = vweird.f32 %v454
        %vm462 = vmor %vm460, %vm461
        %v463 = vsel %vm462, %v454, %v459
        %v464 = vmul.f32 %v451, %v463
        %v465 = vmul.f32 %v452, %v463
        %v466 = vmax.f32 %v464, 0.0
        %v467 = vmax.f32 %v465, 0.0
        %v468 = vld [vmem:[#allocation7] sm:$0xff]
        %469 = vrot.lane.b32.xlu0 %v466, 17
        %v470 = vpop.permute.xlu0 %469
        %471 = vrot.lane.b32.xlu0 %v467, 17
        %v472 = vpop.permute.xlu0 %471
        %v473 = vsel %vm286, %v470, %v472
        %v474 = vsel %vm286, %v472, %v470
        %v475 = vmul.f32 %v474, %v290
        %v476 = vmul.f32 %v473, %v291
        %477 = vrot.lane.b32.xlu0 %v466, 16
        %v478 = vpop.permute.xlu0 %477
        %479 = vrot.lane.b32.xlu0 %v467, 16
        %v480 = vpop.permute.xlu0 %479
        %v481 = vsel %vm300, %v478, %v480
        %v482 = vsel %vm300, %v480, %v478
        %v483 = vmul.f32 %v482, %v304
        %v484 = vmul.f32 %v481, %v305
        %485 = vrot.lane.b32.xlu0 %v466, 15
        %v486 = vpop.permute.xlu0 %485
        %487 = vrot.lane.b32.xlu0 %v467, 15
        %v488 = vpop.permute.xlu0 %487
        %v489 = vsel %vm314, %v486, %v488
        %v490 = vsel %vm314, %v488, %v486
        %v491 = vmul.f32 %v490, %v318
        %v492 = vmul.f32 %v489, %v319
        %493 = vrot.lane.b32.xlu0 %v466, 1
        %v494 = vpop.permute.xlu0 %493
        %495 = vrot.lane.b32.xlu0 %v467, 1
        %v496 = vpop.permute.xlu0 %495
        %v497 = vsel %vm328, %v494, %v496
        %v498 = vsel %vm328, %v496, %v494
        %v499 = vmul.f32 %v498, %v332
        %v500 = vmul.f32 %v497, %v333
        %501 = vrot.lane.b32.xlu0 %v466, 127
        %v502 = vpop.permute.xlu0 %501
        %503 = vrot.lane.b32.xlu0 %v467, 127
        %v504 = vpop.permute.xlu0 %503
        %v505 = vsel %vm342, %v502, %v504
        %v506 = vsel %vm342, %v504, %v502
        %v507 = vmul.f32 %v505, %v346
        %v508 = vmul.f32 %v506, %v347
        %509 = vrot.lane.b32.xlu0 %v466, 113
        %v510 = vpop.permute.xlu0 %509
        %511 = vrot.lane.b32.xlu0 %v467, 113
        %v512 = vpop.permute.xlu0 %511
        %v513 = vsel %vm356, %v510, %v512
        %v514 = vsel %vm356, %v512, %v510
        %v515 = vmul.f32 %v513, %v360
        %v516 = vmul.f32 %v514, %v361
        %517 = vrot.lane.b32.xlu0 %v466, 112
        %v518 = vpop.permute.xlu0 %517
        %519 = vrot.lane.b32.xlu0 %v467, 112
        %v520 = vpop.permute.xlu0 %519
        %v521 = vsel %vm370, %v518, %v520
        %v522 = vsel %vm370, %v520, %v518
        %v523 = vmul.f32 %v521, %v374
        %v524 = vmul.f32 %v522, %v375
        %525 = vrot.lane.b32.xlu0 %v466, 111
        %v526 = vpop.permute.xlu0 %525
        %527 = vrot.lane.b32.xlu0 %v467, 111
        %v528 = vpop.permute.xlu0 %527
        %v529 = vsel %vm384, %v526, %v528
        %v530 = vsel %vm384, %v528, %v526
        %v531 = vmul.f32 %v529, %v388
        %v532 = vmul.f32 %v530, %v389
        %v534 = vsel %vm394, %v468, 0
        %536 = vmatpush.msra.mxu0 0.0
        %537 = vmatpush.msra.mxu0 0.0
        %538 = vmatpush.msra.mxu0 0.0
        %539 = vmatpush.msra.mxu0 0.0
        %540 = vmatpush.msra.mxu0 0.0
        %541 = vmatpush.msra.mxu0 0.0
        %542 = vmatpush.msra.mxu0 0.0
        %543 = vmatpush.msra.mxu0 %v531
        %544 = vmatpush.msra.mxu0 %v523
        %545 = vmatpush.msra.mxu0 %v515
        %546 = vmatpush.msra.mxu0 %v507
        %547 = vmatpush.msra.mxu0 %v466
        %548 = vmatpush.msra.mxu0 %v499
        %549 = vmatpush.msra.mxu0 %v491
        %550 = vmatpush.msra.mxu0 %v483
        %551 = vmatpush.msra.mxu0 %v475
        %552 = vmatmul.f32.gmra.mxu0 %v534
        %v553 = vpop.f32.mrf.mxu0
        %v554 = vadd.f32 0.0, %v553
        %555 = vdwg.mxu0
        %556 = vmatpush.msra.mxu0 0.0
        %557 = vmatpush.msra.mxu0 0.0
        %558 = vmatpush.msra.mxu0 0.0
        %559 = vmatpush.msra.mxu0 0.0
        %560 = vmatpush.msra.mxu0 0.0
        %561 = vmatpush.msra.mxu0 0.0
        %562 = vmatpush.msra.mxu0 0.0
        %563 = vmatpush.msra.mxu0 %v532
        %564 = vmatpush.msra.mxu0 %v524
        %565 = vmatpush.msra.mxu0 %v516
        %566 = vmatpush.msra.mxu0 %v508
        %567 = vmatpush.msra.mxu0 %v467
        %568 = vmatpush.msra.mxu0 %v500
        %569 = vmatpush.msra.mxu0 %v492
        %570 = vmatpush.msra.mxu0 %v484
        %571 = vmatpush.msra.mxu0 %v476
        %572 = vmatmul.f32.gmra.mxu0 %v534
        %v573 = vpop.f32.mrf.mxu0
        %v574 = vadd.f32 0.0, %v573
        %575 = vdwg.mxu0
        %v576 = vadd.f32 %v554, %v574
        %577 = vadd.xlane.f32.xlu0 %v576
        %v578 = vpop.xlane.xlu0 %577
        %v579 = vmul.f32 %v578, 0.00390625
        %v580 = vmul.f32 %v554, %v554
        %v581 = vmul.f32 %v574, %v574
        %v582 = vadd.f32 %v580, %v581
        %583 = vadd.xlane.f32.xlu0 %v582
        %v584 = vpop.xlane.xlu0 %583
        %v585 = vmul.f32 %v584, 0.00390625
        %v586 = vmul.f32 %v579, %v579
        %v587 = vsub.f32 %v585, %v586
        %v588 = vmax.f32 %v587, 0.0
        %v589 = vsub.f32 %v554, %v579
        %v590 = vsub.f32 %v574, %v579
        %v591 = vadd.f32 %v588, 1e-05
        %v592 = vrsqrt.pop %v591
        %v593 = vmul.f32 %v592, %v591
        %v594 = vmul.f32 %v593, %v592
        %v595 = vmul.f32 0.5, %v594
        %v596 = vsub.f32 1.5, %v595
        %v597 = vmul.f32 %v592, %v596
        %vm598 = vweird.f32 %v591
        %vm599 = vweird.f32 %v592
        %vm600 = vmor %vm598, %vm599
        %v601 = vsel %vm600, %v592, %v597
        %v602 = vmul.f32 %v589, %v601
        %v603 = vmul.f32 %v590, %v601
        %v604 = vadd.f32 %v602, %v262
        %v605 = vadd.f32 %v603, %v263
        %606 = vst [vmem:[%s261] sm:$0xff] %v604
        %607 = vst [vmem:[%s261 + $0x8] sm:$0xff] %v605
        %s608 = sand.u32 %s120, 1
        %s609 = scalar_lea.sflag [#allocation4], %s608
        %s610 = sand.u32 %s120, 1
        %s611 = smul.addr %s610, 16
        %s612 = scalar_lea.vmem [#allocation10], %s611
        // Predicated region
        $region53: #{tpu_custom_call.1} parent=35 // pred_check
          %p613 = pneg %p130
        $region54: #{tpu_custom_call.1} parent=35 // pred_check_branch
          %615 = sbr.rel (%p613) target = $region56
        $region55: #{tpu_custom_call.1} parent=35 // pred_region
          %617 = vsyncadd %s609, 0
          %s618 = smul.addr %s23, 2
          %s619 = smul.addr %s618, 8
          %s620 = scalar_lea.hbm %s4, %s619
          %s622 = sshll.u32 %s612, 4
          %s623 = int_to_ptr.vmem [resolvable:$true] %s622
          %s624 = sshll.u32 %s620, 4
          %s625 = int_to_ptr.hbm [resolvable:$true] %s624
          %627 = dma.vmem_to_hbm [thread:$0]  %s623, 256, %s625, %s609
        $region56: #{tpu_custom_call.1} parent=35 // pred_fallthru
          _
      $region36: #{tpu_custom_call.1} parent=5 // pred_fallthru
        _
      %p628 = scmp.le.s32.totalorder 2, %s18
      // Predicated region
      $region57: #{tpu_custom_call.1} parent=5 // pred_check
        %p629 = pneg %p628
      $region58: #{tpu_custom_call.1} parent=5 // pred_check_branch
        %631 = sbr.rel (%p629) target = $region60
      $region59: #{tpu_custom_call.1} parent=5 // pred_region
        %s632 = ssub.s32 %s18, 2
        // Predicated region
        $region61: #{tpu_custom_call.1} parent=59 // pred_check
          %p633 = pneg %p136
        $region62: #{tpu_custom_call.1} parent=59 // pred_check_branch
          %635 = sbr.rel (%p633) target = $region64
        $region63: #{tpu_custom_call.1} parent=59 // pred_region
          %s636 = sand.u32 %s121, 1
          %s637 = scalar_lea.sflag [#allocation4], %s636
          %s638 = sand.u32 %s121, 1
          %s639 = smul.addr %s638, 16
          %s640 = scalar_lea.vmem [#allocation10], %s639
          %642 = dma.done %s637, 256
        $region64: #{tpu_custom_call.1} parent=59 // pred_fallthru
          _
      $region60: #{tpu_custom_call.1} parent=5 // pred_fallthru
        _
    $region6: #{tpu_custom_call.1} parent=1 // loop_footer
      %s22 = sadd.s32 1, %s18
    $region7: #{tpu_custom_call.1} parent=1 // loop_footer_branch
      %17 = sbr.rel target = $region3
    $region8: #{tpu_custom_call.1} parent=1 // loop_exit
      _
    %643 = vsyncpa [#allocation3], 1
    %s644 = scalar_lea.sflag [#allocation3], 1
    %645 = vsyncpa %s644, 1
    %646 = vsyncpa [#allocation6], 1
    %647 = vsyncpa [#allocation9], 1
    %648 = vsyncpa [#allocation4], 1
    %s649 = scalar_lea.sflag [#allocation4], 1
    %650 = vsyncpa %s649, 1

</llo_original>
